<compile_context>
chip_gen: v7x
topology: tpu7x:2x2x1
jax: 0.10.0
libtpu: 0.0.40
codegen_flags: <defaults>
</compile_context>

<pallas_src>
import numpy as np
import jax
import jax.numpy as jnp
from jax.experimental import pallas as pl
from jax.experimental.pallas import tpu as pltpu


# ----------------------------------------------------------------------------
# Fused kernel: T GRUCell steps (PyTorch semantics, gate order r, z, n) + fc_out
# ----------------------------------------------------------------------------
def rnn_decoder_kernel(x_ref, h0_ref, wh_ref, rows_ref, fc_ref,
                       pred_ref, hout_ref):
    t = pl.program_id(0)
    B, H = h0_ref.shape

    # Hidden state lives in the (constant-index) output block: init on step 0.
    @pl.when(t == 0)
    def _init():
        hout_ref[...] = h0_ref[...]

    x = x_ref[0]                       # (B, 1)   dropout(p=0) == identity
    h = hout_ref[...]                  # (B, H)   persistent across grid steps

    wi   = rows_ref[0:1, :]            # (1, 3H)  = w_ih.T
    b_ih = rows_ref[1:2, :]            # (1, 3H)
    b_hh = rows_ref[2:3, :]            # (1, 3H)

    # input_size == 1 -> input projection is a VPU broadcast multiply.
    gi = x * wi + b_ih                                                # (B, 3H)
    # All three hidden-gate projections in a single MXU matmul.
    gh = jnp.dot(h, wh_ref[...], preferred_element_type=jnp.float32) + b_hh

    # PyTorch GRUCell:
    #   r = sigmoid(gi_r + gh_r); z = sigmoid(gi_z + gh_z)
    #   n = tanh(gi_n + r * gh_n);  h' = (1 - z) * n + z * h
    r = jax.nn.sigmoid(gi[:, 0 * H:1 * H] + gh[:, 0 * H:1 * H])
    z = jax.nn.sigmoid(gi[:, 1 * H:2 * H] + gh[:, 1 * H:2 * H])
    n = jnp.tanh(gi[:, 2 * H:3 * H] + r * gh[:, 2 * H:3 * H])
    h_new = (1.0 - z) * n + z * h                                     # (B, H)

    hout_ref[...] = h_new

    # fc_out: prediction = h_new @ W_fc^T + b_fc
    wfc = fc_ref[0:H, :]               # (H, O)
    bfc = fc_ref[H:H + 1, :]           # (1, O)
    pred_ref[0] = (jnp.dot(h_new, wfc, preferred_element_type=jnp.float32)
                   + bfc)


# ----------------------------------------------------------------------------
# Wrapper: packs torch-layout weights into 3 slabs (once, under jit) and runs
# the whole T-step decode in a single pallas_call.
# ----------------------------------------------------------------------------
@jax.jit
def rnn_decoder_rollout(x_seq, h0, w_ih, w_hh, b_ih, b_hh, w_fc, b_fc):
    T, B, _ = x_seq.shape
    H = h0.shape[1]
    O = w_fc.shape[0]
    H3 = 3 * H

    # torch layouts: w_ih (3H, 1), w_hh (3H, H), biases (3H,), w_fc (O, H).
    wh_all = w_hh.T.astype(jnp.float32)                               # (H, 3H)
    rows = jnp.stack([w_ih.reshape(H3), b_ih, b_hh], 0).astype(jnp.float32)  # (3, 3H)
    fc_slab = jnp.concatenate([w_fc.T, b_fc.reshape(1, O)], 0).astype(jnp.float32)  # (H+1, O)
    x_seq = x_seq.astype(jnp.float32)
    h0 = h0.astype(jnp.float32)

    flops = T * (2 * B * H * H3 + 2 * B * H * O + 10 * B * H3)
    transcendentals = T * 3 * B * H
    bytes_accessed = 4 * (x_seq.size + h0.size + wh_all.size + rows.size
                          + fc_slab.size + T * B * O + B * H)

    preds, h_final = pl.pallas_call(
        rnn_decoder_kernel,
        grid=(T,),
        in_specs=[
            pl.BlockSpec((1, B, 1), lambda t: (t, 0, 0)),   # x_t streamed per step
            pl.BlockSpec((B, H), lambda t: (0, 0)),          # h0 (fetched once)
            pl.BlockSpec((H, H3), lambda t: (0, 0)),         # w_hh^T   (resident)
            pl.BlockSpec((3, H3), lambda t: (0, 0)),         # [w_ih^T; b_ih; b_hh]
            pl.BlockSpec((H + 1, O), lambda t: (0, 0)),      # [w_fc^T; b_fc]
        ],
        out_specs=(
            pl.BlockSpec((1, B, O), lambda t: (t, 0, 0)),    # pred_t per step
            pl.BlockSpec((B, H), lambda t: (0, 0)),          # final hidden (resident)
        ),
        out_shape=(
            jax.ShapeDtypeStruct((T, B, O), jnp.float32),
            jax.ShapeDtypeStruct((B, H), jnp.float32),
        ),
        input_output_aliases={1: 1},                         # h0 buffer -> h_final
        compiler_params=pltpu.CompilerParams(
            dimension_semantics=("arbitrary",)),
        cost_estimate=pl.CostEstimate(flops=flops,
                                      transcendentals=transcendentals,
                                      bytes_accessed=bytes_accessed),
    )(x_seq, h0, wh_all, rows, fc_slab)
    return preds, h_final


def rnn_decoder_forward(x, h, w_ih, w_hh, b_ih, b_hh, w_fc, b_fc):
    """Single-step forward identical to the PyTorch module's forward()."""
    preds, h_new = rnn_decoder_rollout(x[None], h, w_ih, w_hh, b_ih, b_hh,
                                       w_fc, b_fc)
    return preds[0], h_new


# ----------------------------------------------------------------------------
# Pure-JAX reference (direct translation of the PyTorch GRUCell + Linear math)
# ----------------------------------------------------------------------------
def reference_rollout(x_seq, h0, w_ih, w_hh, b_ih, b_hh, w_fc, b_fc):
    H = h0.shape[1]
    h = h0
    preds = []
    for t in range(x_seq.shape[0]):
        x = x_seq[t]
        gi = x @ w_ih.T + b_ih
        gh = h @ w_hh.T + b_hh
        i_r, i_z, i_n = gi[:, :H], gi[:, H:2 * H], gi[:, 2 * H:]
        h_r, h_z, h_n = gh[:, :H], gh[:, H:2 * H], gh[:, 2 * H:]
        r = jax.nn.sigmoid(i_r + h_r)
        z = jax.nn.sigmoid(i_z + h_z)
        n = jnp.tanh(i_n + r * h_n)
        h = (1.0 - z) * n + z * h
        preds.append(h @ w_fc.T + b_fc)
    return jnp.stack(preds, axis=0), h


if __name__ == "__main__":
    # Small shapes consistent with the module: batch=2, hid_dim=32,
    # output_dim=4, decode sequence length T=8.
    T, B, H, O = 8, 2, 32, 4

    key = jax.random.PRNGKey(0)
    kx, kh, k1, k2, k3, k4, k5, k6 = jax.random.split(key, 8)

    x_seq = jax.random.normal(kx, (T, B, 1), jnp.float32)   # decoder inputs (1 feature)
    h0 = jax.random.normal(kh, (B, H), jnp.float32)         # initial hidden state

    # torch-layout parameters
    w_ih = 0.3 * jax.random.normal(k1, (3 * H, 1), jnp.float32)
    w_hh = 0.3 * jax.random.normal(k2, (3 * H, H), jnp.float32)
    b_ih = 0.1 * jax.random.normal(k3, (3 * H,), jnp.float32)
    b_hh = 0.1 * jax.random.normal(k4, (3 * H,), jnp.float32)
    w_fc = 0.3 * jax.random.normal(k5, (O, H), jnp.float32)
    b_fc = 0.1 * jax.random.normal(k6, (O,), jnp.float32)

    # Full T-step decode in one pallas_call.
    preds, h_final = rnn_decoder_rollout(x_seq, h0, w_ih, w_hh, b_ih, b_hh,
                                         w_fc, b_fc)
    preds = jax.block_until_ready(preds)
    h_final = jax.block_until_ready(h_final)

    preds_ref, h_ref = reference_rollout(x_seq, h0, w_ih, w_hh, b_ih, b_hh,
                                         w_fc, b_fc)
    assert preds.shape == (T, B, O) and h_final.shape == (B, H)
    np.testing.assert_allclose(np.asarray(preds), np.asarray(preds_ref),
                               atol=1e-4, rtol=1e-4)
    np.testing.assert_allclose(np.asarray(h_final), np.asarray(h_ref),
                               atol=1e-4, rtol=1e-4)

    # Single-step call, exactly matching the module's forward(input, hidden).
    pred1, h1 = rnn_decoder_forward(x_seq[0], h0, w_ih, w_hh, b_ih, b_hh,
                                    w_fc, b_fc)
    pred1 = jax.block_until_ready(pred1)
    np.testing.assert_allclose(np.asarray(pred1), np.asarray(preds_ref[0]),
                               atol=1e-4, rtol=1e-4)

    # TODO(synk): nn.Dropout is identity here (p=0.0 / inference); a training
    # dropout mask is not implemented.
    print("KERNEL_OK")
</pallas_src>

<mosaic_0001>
module attributes {stable_mosaic.version = 11 : i64} {
  func.func @rnn_decoder_kernel(%arg0: i32, %arg1: memref<1x2x1xf32, #tpu.memory_space<vmem>>, %arg2: memref<2x32xf32, #tpu.memory_space<vmem>>, %arg3: memref<32x96xf32, #tpu.memory_space<vmem>>, %arg4: memref<3x96xf32, #tpu.memory_space<vmem>>, %arg5: memref<33x4xf32, #tpu.memory_space<vmem>>, %arg6: memref<1x2x4xf32, #tpu.memory_space<vmem>>, %arg7: memref<2x32xf32, #tpu.memory_space<vmem>>) attributes {dimension_semantics = [#tpu.dimension_semantics<arbitrary>], iteration_bounds = array<i64: 8>, scalar_prefetch = 0 : i64, scratch_operands = 0 : i64, tpu.core_type = #tpu.core_type<tc>, window_params = [{transform_indices = @transform_0, window_bounds = array<i64: 1, 2, 1>}, {pipeline_mode = #tpu.pipeline_mode<synchronous>, transform_indices = @transform_1, window_bounds = array<i64: 2, 32>}, {pipeline_mode = #tpu.pipeline_mode<synchronous>, transform_indices = @transform_2, window_bounds = array<i64: 32, 96>}, {pipeline_mode = #tpu.pipeline_mode<synchronous>, transform_indices = @transform_3, window_bounds = array<i64: 3, 96>}, {pipeline_mode = #tpu.pipeline_mode<synchronous>, transform_indices = @transform_4, window_bounds = array<i64: 33, 4>}, {transform_indices = @transform_5, window_bounds = array<i64: 1, 2, 4>}, {pipeline_mode = #tpu.pipeline_mode<synchronous>, transform_indices = @transform_6, window_bounds = array<i64: 2, 32>}]} {
    %c0_i32 = arith.constant 0 : i32
    %0 = arith.cmpi eq, %arg0, %c0_i32 : i32
    %1 = arith.extui %0 : i1 to i32
    %c0_i32_0 = arith.constant 0 : i32
    %2 = arith.cmpi ne, %1, %c0_i32_0 : i32
    scf.if %2 {
      %c0_23 = arith.constant 0 : index
      %c0_24 = arith.constant 0 : index
      %53 = vector.load %arg2[%c0_23, %c0_24] : memref<2x32xf32, #tpu.memory_space<vmem>>, vector<2x32xf32>
      %c0_25 = arith.constant 0 : index
      %c0_26 = arith.constant 0 : index
      %54 = vector.load %arg7[%c0_25, %c0_26] : memref<2x32xf32, #tpu.memory_space<vmem>>, vector<2x32xf32>
      tpu.vector_store %arg7[%c0_25, %c0_26], %53 {strides = array<i32>} : memref<2x32xf32, #tpu.memory_space<vmem>>, vector<2x32xf32>,
    } else {
    }
    %c0 = arith.constant 0 : index
    %c0_1 = arith.constant 0 : index
    %c0_2 = arith.constant 0 : index
    %3 = vector.load %arg1[%c0, %c0_1, %c0_2] : memref<1x2x1xf32, #tpu.memory_space<vmem>>, vector<1x2x1xf32>
    %4 = vector.shape_cast %3 : vector<1x2x1xf32> to vector<2x1xf32>
    %c0_3 = arith.constant 0 : index
    %c0_4 = arith.constant 0 : index
    %5 = vector.load %arg7[%c0_3, %c0_4] : memref<2x32xf32, #tpu.memory_space<vmem>>, vector<2x32xf32>
    %c0_5 = arith.constant 0 : index
    %c0_6 = arith.constant 0 : index
    %6 = vector.load %arg4[%c0_5, %c0_6] : memref<3x96xf32, #tpu.memory_space<vmem>>, vector<1x96xf32>
    %c1 = arith.constant 1 : index
    %c0_7 = arith.constant 0 : index
    %7 = vector.load %arg4[%c1, %c0_7] : memref<3x96xf32, #tpu.memory_space<vmem>>, vector<1x96xf32>
    %c2 = arith.constant 2 : index
    %c0_8 = arith.constant 0 : index
    %8 = vector.load %arg4[%c2, %c0_8] : memref<3x96xf32, #tpu.memory_space<vmem>>, vector<1x96xf32>
    %9 = vector.broadcast %4 : vector<2x1xf32> to vector<2x96xf32>
    %10 = vector.broadcast %6 : vector<1x96xf32> to vector<2x96xf32>
    %11 = arith.mulf %9, %10 : vector<2x96xf32>
    %12 = vector.broadcast %7 : vector<1x96xf32> to vector<2x96xf32>
    %13 = arith.addf %11, %12 : vector<2x96xf32>
    %c0_9 = arith.constant 0 : index
    %c0_10 = arith.constant 0 : index
    %14 = vector.load %arg3[%c0_9, %c0_10] : memref<32x96xf32, #tpu.memory_space<vmem>>, vector<32x96xf32>
    %cst = arith.constant dense<0.000000e+00> : vector<2x96xf32>
    %15 = tpu.matmul %5, %14, %cst {dimension_numbers = #tpu.dot_dimension_numbers<[1], [0], [0], [1], [0, 0, 1, 1], [], []>} : vector<2x32xf32>, vector<32x96xf32>, vector<2x96xf32> -> vector<2x96xf32>
    %16 = vector.broadcast %8 : vector<1x96xf32> to vector<2x96xf32>
    %17 = arith.addf %15, %16 : vector<2x96xf32>
    %18 = vector.extract_strided_slice %13 {offsets = [0, 0], sizes = [2, 32], strides = [1, 1]} : vector<2x96xf32> to vector<2x32xf32>
    %19 = vector.extract_strided_slice %17 {offsets = [0, 0], sizes = [2, 32], strides = [1, 1]} : vector<2x96xf32> to vector<2x32xf32>
    %20 = arith.addf %18, %19 : vector<2x32xf32>
    %21 = arith.negf %20 : vector<2x32xf32>
    %22 = math.exp %21 : vector<2x32xf32>
    %cst_11 = arith.constant 1.000000e+00 : f32
    %23 = vector.broadcast %cst_11 : f32 to vector<2x32xf32>
    %24 = arith.addf %23, %22 : vector<2x32xf32>
    %25 = arith.divf %23, %24 : vector<2x32xf32>
    %26 = vector.extract_strided_slice %13 {offsets = [0, 32], sizes = [2, 32], strides = [1, 1]} : vector<2x96xf32> to vector<2x32xf32>
    %27 = vector.extract_strided_slice %17 {offsets = [0, 32], sizes = [2, 32], strides = [1, 1]} : vector<2x96xf32> to vector<2x32xf32>
    %28 = arith.addf %26, %27 : vector<2x32xf32>
    %29 = arith.negf %28 : vector<2x32xf32>
    %30 = math.exp %29 : vector<2x32xf32>
    %cst_12 = arith.constant 1.000000e+00 : f32
    %31 = vector.broadcast %cst_12 : f32 to vector<2x32xf32>
    %32 = arith.addf %31, %30 : vector<2x32xf32>
    %33 = arith.divf %31, %32 : vector<2x32xf32>
    %34 = vector.extract_strided_slice %13 {offsets = [0, 64], sizes = [2, 32], strides = [1, 1]} : vector<2x96xf32> to vector<2x32xf32>
    %35 = vector.extract_strided_slice %17 {offsets = [0, 64], sizes = [2, 32], strides = [1, 1]} : vector<2x96xf32> to vector<2x32xf32>
    %36 = arith.mulf %25, %35 : vector<2x32xf32>
    %37 = arith.addf %34, %36 : vector<2x32xf32>
    %38 = math.tanh %37 : vector<2x32xf32>
    %cst_13 = arith.constant 1.000000e+00 : f32
    %39 = vector.broadcast %cst_13 : f32 to vector<2x32xf32>
    %40 = arith.subf %39, %33 : vector<2x32xf32>
    %41 = arith.mulf %40, %38 : vector<2x32xf32>
    %42 = arith.mulf %33, %5 : vector<2x32xf32>
    %43 = arith.addf %41, %42 : vector<2x32xf32>
    %c0_14 = arith.constant 0 : index
    %c0_15 = arith.constant 0 : index
    %44 = vector.load %arg7[%c0_14, %c0_15] : memref<2x32xf32, #tpu.memory_space<vmem>>, vector<2x32xf32>
    tpu.vector_store %arg7[%c0_14, %c0_15], %43 {strides = array<i32>} : memref<2x32xf32, #tpu.memory_space<vmem>>, vector<2x32xf32>,
    %c0_16 = arith.constant 0 : index
    %c0_17 = arith.constant 0 : index
    %45 = vector.load %arg5[%c0_16, %c0_17] : memref<33x4xf32, #tpu.memory_space<vmem>>, vector<32x4xf32>
    %c32 = arith.constant 32 : index
    %c0_18 = arith.constant 0 : index
    %46 = vector.load %arg5[%c32, %c0_18] : memref<33x4xf32, #tpu.memory_space<vmem>>, vector<1x4xf32>
    %cst_19 = arith.constant dense<0.000000e+00> : vector<2x4xf32>
    %47 = tpu.matmul %43, %45, %cst_19 {dimension_numbers = #tpu.dot_dimension_numbers<[1], [0], [0], [1], [0, 0, 1, 1], [], []>} : vector<2x32xf32>, vector<32x4xf32>, vector<2x4xf32> -> vector<2x4xf32>
    %48 = vector.broadcast %46 : vector<1x4xf32> to vector<2x4xf32>
    %49 = arith.addf %47, %48 : vector<2x4xf32>
    %c0_20 = arith.constant 0 : index
    %c0_21 = arith.constant 0 : index
    %c0_22 = arith.constant 0 : index
    %50 = vector.load %arg6[%c0_20, %c0_21, %c0_22] : memref<1x2x4xf32, #tpu.memory_space<vmem>>, vector<1x2x4xf32>
    %51 = vector.shape_cast %50 : vector<1x2x4xf32> to vector<2x4xf32>
    %52 = vector.shape_cast %49 : vector<2x4xf32> to vector<1x2x4xf32>
    tpu.vector_store %arg6[%c0_20, %c0_21, %c0_22], %52 {strides = array<i32>} : memref<1x2x4xf32, #tpu.memory_space<vmem>>, vector<1x2x4xf32>,
    return
  }
  func.func @transform_0(%arg0: i32) -> (i32, i32, i32) {
    %c0_i32 = arith.constant 0 : i32
    %c0_i32_0 = arith.constant 0 : i32
    %c0_i32_1 = arith.constant 0 : i32
    return %arg0, %c0_i32, %c0_i32_0 : i32, i32, i32
  }
  func.func @transform_1(%arg0: i32) -> (i32, i32) {
    %c0_i32 = arith.constant 0 : i32
    %c0_i32_0 = arith.constant 0 : i32
    %c0_i32_1 = arith.constant 0 : i32
    return %c0_i32, %c0_i32_0 : i32, i32
  }
  func.func @transform_2(%arg0: i32) -> (i32, i32) {
    %c0_i32 = arith.constant 0 : i32
    %c0_i32_0 = arith.constant 0 : i32
    %c0_i32_1 = arith.constant 0 : i32
    return %c0_i32, %c0_i32_0 : i32, i32
  }
  func.func @transform_3(%arg0: i32) -> (i32, i32) {
    %c0_i32 = arith.constant 0 : i32
    %c0_i32_0 = arith.constant 0 : i32
    %c0_i32_1 = arith.constant 0 : i32
    return %c0_i32, %c0_i32_0 : i32, i32
  }
  func.func @transform_4(%arg0: i32) -> (i32, i32) {
    %c0_i32 = arith.constant 0 : i32
    %c0_i32_0 = arith.constant 0 : i32
    %c0_i32_1 = arith.constant 0 : i32
    return %c0_i32, %c0_i32_0 : i32, i32
  }
  func.func @transform_5(%arg0: i32) -> (i32, i32, i32) {
    %c0_i32 = arith.constant 0 : i32
    %c0_i32_0 = arith.constant 0 : i32
    %c0_i32_1 = arith.constant 0 : i32
    return %arg0, %c0_i32, %c0_i32_0 : i32, i32, i32
  }
  func.func @transform_6(%arg0: i32) -> (i32, i32) {
    %c0_i32 = arith.constant 0 : i32
    %c0_i32_0 = arith.constant 0 : i32
    %c0_i32_1 = arith.constant 0 : i32
    return %c0_i32, %c0_i32_0 : i32, i32
  }
}

</mosaic_0001>

<llo_original>
// kernel: rnn_decoder_rollout.1
$region0: #{rnn_decoder_rollout.1}
  #allocation0 [shape = 'u32[]', space=smem, size = 0x4, offset = 0x4, fixed_abs, tag = 'smem constant byte address 0x4 - core index']
  #allocation1 [shape = 'u32[144,128]{1,0:T(1,128)}', space=vmem, size = 0x12000, scoped, tag = 'internal scratch']
  %s0 = inlined_call_operand.vmem [shape: f32[8,2,1], index: 0, kind: input, shape index: {}]
  %s1 = inlined_call_operand.vmem [shape: f32[2,32], index: 1, kind: input, shape index: {}, may-alias: {1,6}]
  %s2 = inlined_call_operand.vmem [shape: f32[32,96], index: 2, kind: input, shape index: {}]
  %s3 = inlined_call_operand.vmem [shape: f32[3,96], index: 3, kind: input, shape index: {}]
  %s4 = inlined_call_operand.vmem [shape: f32[33,4], index: 4, kind: input, shape index: {}]
  %s5 = inlined_call_operand.vmem [shape: f32[8,2,4], index: 5, kind: output, shape index: {0}]
  %s6 = inlined_call_operand.vmem [shape: f32[2,32], index: 6, kind: output, shape index: {1}, may-alias: {1,6}]
  %7 = xla_tuple %s5, %s6
  %s8 = sld [smem:[#allocation0]]
  $region65: #{rnn_decoder_rollout.1} parent=0
    _
  %s10 = ssub.s32 1, %s8
  %s11 = scalar_select 0, %s10, %s8
  loop: start=0, step=1, limit=10
  $region2: #{rnn_decoder_rollout.1} parent=0 // loop_pre_header
    _
  $region3: #{rnn_decoder_rollout.1} parent=0 // loop_header
    %s13 = sphi 0, %s17
    %p14 = scmp.ge.s32.totalorder %s13, 10
    %s23 = sphi 0, %s25
    %s26 = sphi 0, %s23
    %s27 = sphi 0, %s26
    %s43 = sphi 0, %s27
    %s47 = sphi 0, %s47
    %s49 = sphi 0, %s47
    %s50 = sphi 0, %s49
    %s64 = sphi 0, %s50
    %s68 = sphi 0, %s68
    %s70 = sphi 0, %s68
    %s71 = sphi 0, %s70
    %s85 = sphi 0, %s71
    %s89 = sphi 0, %s89
    %s91 = sphi 0, %s89
    %s92 = sphi 0, %s91
    %s106 = sphi 0, %s92
    %s110 = sphi 0, %s110
    %s112 = sphi 0, %s110
    %s113 = sphi 0, %s112
    %s127 = sphi 0, %s113
    %s133 = sphi 0, %s135
    %s136 = sphi 0, %s133
    %s137 = sphi 0, %s136
    %s153 = sphi 0, %s137
    %s157 = sphi 0, %s157
    %s159 = sphi 0, %s157
    %s160 = sphi 0, %s159
    %s174 = sphi 0, %s160
  $region4: #{rnn_decoder_rollout.1} parent=0 // loop_header_branch
    %16 = sbr.rel (%p14) target = $region8
  $region5: #{rnn_decoder_rollout.1} parent=0 // loop_body
    %s18 = ssub.s32 %s13, 1
    %s19 = ssub.s32 %s13, 2
    %s20 = sadd.s32 %s13, 1
    %s21 = ssub.s32 %s13, %s20
    %p22 = scmp.eq.s32.totalorder %s21, 0
    %s24 = sadd.s32 %s23, 1
    %s25 = scalar_select %p22, %s23, %s24
    %p28 = pneg %p22
    %p29 = scmp.eq.s32.totalorder %s13, 7
    %p30 = por %p28, %p29
    %p31 = scmp.ne.s32.totalorder %s23, %s26
    %p32 = scmp.eq.s32.totalorder %s13, 0
    %p33 = por %p31, %p32
    %p34 = scmp.ne.s32.totalorder %s23, %s26
    %p35 = scmp.eq.s32.totalorder %s18, 7
    %p36 = por %p34, %p35
    %p37 = scmp.ne.s32.totalorder %s26, %s27
    %p38 = scmp.eq.s32.totalorder %s18, 0
    %p39 = por %p37, %p38
    %p40 = scmp.ne.s32.totalorder %s26, %s27
    %p41 = scmp.eq.s32.totalorder %s19, 7
    %p42 = por %p40, %p41
    %p44 = scmp.ne.s32.totalorder %s27, %s43
    %p45 = scmp.eq.s32.totalorder %s19, 0
    %p46 = por %p44, %p45
    %s48 = sadd.s32 %s47, 1
    %p51 = scmp.eq.s32.totalorder %s13, 7
    %p52 = scmp.ne.s32.totalorder %s47, %s49
    %p53 = scmp.eq.s32.totalorder %s13, 0
    %p54 = por %p52, %p53
    %p55 = scmp.ne.s32.totalorder %s47, %s49
    %p56 = scmp.eq.s32.totalorder %s18, 7
    %p57 = por %p55, %p56
    %p58 = scmp.ne.s32.totalorder %s49, %s50
    %p59 = scmp.eq.s32.totalorder %s18, 0
    %p60 = por %p58, %p59
    %p61 = scmp.ne.s32.totalorder %s49, %s50
    %p62 = scmp.eq.s32.totalorder %s19, 7
    %p63 = por %p61, %p62
    %p65 = scmp.ne.s32.totalorder %s50, %s64
    %p66 = scmp.eq.s32.totalorder %s19, 0
    %p67 = por %p65, %p66
    %s69 = sadd.s32 %s68, 1
    %p72 = scmp.eq.s32.totalorder %s13, 7
    %p73 = scmp.ne.s32.totalorder %s68, %s70
    %p74 = scmp.eq.s32.totalorder %s13, 0
    %p75 = por %p73, %p74
    %p76 = scmp.ne.s32.totalorder %s68, %s70
    %p77 = scmp.eq.s32.totalorder %s18, 7
    %p78 = por %p76, %p77
    %p79 = scmp.ne.s32.totalorder %s70, %s71
    %p80 = scmp.eq.s32.totalorder %s18, 0
    %p81 = por %p79, %p80
    %p82 = scmp.ne.s32.totalorder %s70, %s71
    %p83 = scmp.eq.s32.totalorder %s19, 7
    %p84 = por %p82, %p83
    %p86 = scmp.ne.s32.totalorder %s71, %s85
    %p87 = scmp.eq.s32.totalorder %s19, 0
    %p88 = por %p86, %p87
    %s90 = sadd.s32 %s89, 1
    %p93 = scmp.eq.s32.totalorder %s13, 7
    %p94 = scmp.ne.s32.totalorder %s89, %s91
    %p95 = scmp.eq.s32.totalorder %s13, 0
    %p96 = por %p94, %p95
    %p97 = scmp.ne.s32.totalorder %s89, %s91
    %p98 = scmp.eq.s32.totalorder %s18, 7
    %p99 = por %p97, %p98
    %p100 = scmp.ne.s32.totalorder %s91, %s92
    %p101 = scmp.eq.s32.totalorder %s18, 0
    %p102 = por %p100, %p101
    %p103 = scmp.ne.s32.totalorder %s91, %s92
    %p104 = scmp.eq.s32.totalorder %s19, 7
    %p105 = por %p103, %p104
    %p107 = scmp.ne.s32.totalorder %s92, %s106
    %p108 = scmp.eq.s32.totalorder %s19, 0
    %p109 = por %p107, %p108
    %s111 = sadd.s32 %s110, 1
    %p114 = scmp.eq.s32.totalorder %s13, 7
    %p115 = scmp.ne.s32.totalorder %s110, %s112
    %p116 = scmp.eq.s32.totalorder %s13, 0
    %p117 = por %p115, %p116
    %p118 = scmp.ne.s32.totalorder %s110, %s112
    %p119 = scmp.eq.s32.totalorder %s18, 7
    %p120 = por %p118, %p119
    %p121 = scmp.ne.s32.totalorder %s112, %s113
    %p122 = scmp.eq.s32.totalorder %s18, 0
    %p123 = por %p121, %p122
    %p124 = scmp.ne.s32.totalorder %s112, %s113
    %p125 = scmp.eq.s32.totalorder %s19, 7
    %p126 = por %p124, %p125
    %p128 = scmp.ne.s32.totalorder %s113, %s127
    %p129 = scmp.eq.s32.totalorder %s19, 0
    %p130 = por %p128, %p129
    %s131 = ssub.s32 %s13, %s20
    %p132 = scmp.eq.s32.totalorder %s131, 0
    %s134 = sadd.s32 %s133, 1
    %s135 = scalar_select %p132, %s133, %s134
    %p138 = pneg %p132
    %p139 = scmp.eq.s32.totalorder %s13, 7
    %p140 = por %p138, %p139
    %p141 = scmp.ne.s32.totalorder %s133, %s136
    %p142 = scmp.eq.s32.totalorder %s13, 0
    %p143 = por %p141, %p142
    %p144 = scmp.ne.s32.totalorder %s133, %s136
    %p145 = scmp.eq.s32.totalorder %s18, 7
    %p146 = por %p144, %p145
    %p147 = scmp.ne.s32.totalorder %s136, %s137
    %p148 = scmp.eq.s32.totalorder %s18, 0
    %p149 = por %p147, %p148
    %p150 = scmp.ne.s32.totalorder %s136, %s137
    %p151 = scmp.eq.s32.totalorder %s19, 7
    %p152 = por %p150, %p151
    %p154 = scmp.ne.s32.totalorder %s137, %s153
    %p155 = scmp.eq.s32.totalorder %s19, 0
    %p156 = por %p154, %p155
    %s158 = sadd.s32 %s157, 1
    %p161 = scmp.eq.s32.totalorder %s13, 7
    %p162 = scmp.ne.s32.totalorder %s157, %s159
    %p163 = scmp.eq.s32.totalorder %s13, 0
    %p164 = por %p162, %p163
    %p165 = scmp.ne.s32.totalorder %s157, %s159
    %p166 = scmp.eq.s32.totalorder %s18, 7
    %p167 = por %p165, %p166
    %p168 = scmp.ne.s32.totalorder %s159, %s160
    %p169 = scmp.eq.s32.totalorder %s18, 0
    %p170 = por %p168, %p169
    %p171 = scmp.ne.s32.totalorder %s159, %s160
    %p172 = scmp.eq.s32.totalorder %s19, 7
    %p173 = por %p171, %p172
    %p175 = scmp.ne.s32.totalorder %s160, %s174
    %p176 = scmp.eq.s32.totalorder %s19, 0
    %p177 = por %p175, %p176
    %p178 = scmp.le.s32.totalorder 1, %s13
    %p179 = scmp.lt.s32.totalorder %s13, 9
    %p180 = pnand %p178, %p179
    %p181 = pneg %p180
    // Predicated region
    $region9: #{rnn_decoder_rollout.1} parent=5 // pred_check
      _
    $region10: #{rnn_decoder_rollout.1} parent=5 // pred_check_branch
      %183 = sbr.rel (%p180) target = $region12
    $region11: #{rnn_decoder_rollout.1} parent=5 // pred_region
      %s184 = ssub.s32 %s13, 1
      // Predicated region
      $region13: #{rnn_decoder_rollout.1} parent=11 // pred_check
        %p185 = pneg %p60
      $region14: #{rnn_decoder_rollout.1} parent=11 // pred_check_branch
        %187 = sbr.rel (%p185) target = $region16
      $region15: #{rnn_decoder_rollout.1} parent=11 // pred_region
        _
      $region16: #{rnn_decoder_rollout.1} parent=11 // pred_fallthru
        _
      // Predicated region
      $region17: #{rnn_decoder_rollout.1} parent=11 // pred_check
        %p188 = pneg %p81
      $region18: #{rnn_decoder_rollout.1} parent=11 // pred_check_branch
        %190 = sbr.rel (%p188) target = $region20
      $region19: #{rnn_decoder_rollout.1} parent=11 // pred_region
        _
      $region20: #{rnn_decoder_rollout.1} parent=11 // pred_fallthru
        _
      // Predicated region
      $region21: #{rnn_decoder_rollout.1} parent=11 // pred_check
        %p191 = pneg %p102
      $region22: #{rnn_decoder_rollout.1} parent=11 // pred_check_branch
        %193 = sbr.rel (%p191) target = $region24
      $region23: #{rnn_decoder_rollout.1} parent=11 // pred_region
        _
      $region24: #{rnn_decoder_rollout.1} parent=11 // pred_fallthru
        _
      // Predicated region
      $region25: #{rnn_decoder_rollout.1} parent=11 // pred_check
        %p194 = pneg %p123
      $region26: #{rnn_decoder_rollout.1} parent=11 // pred_check_branch
        %196 = sbr.rel (%p194) target = $region28
      $region27: #{rnn_decoder_rollout.1} parent=11 // pred_region
        _
      $region28: #{rnn_decoder_rollout.1} parent=11 // pred_fallthru
        _
    $region12: #{rnn_decoder_rollout.1} parent=5 // pred_fallthru
      _
    %p197 = scmp.lt.s32.totalorder %s13, 8
    // Predicated region
    $region29: #{rnn_decoder_rollout.1} parent=5 // pred_check
      %p198 = pneg %p197
    $region30: #{rnn_decoder_rollout.1} parent=5 // pred_check_branch
      %200 = sbr.rel (%p198) target = $region32
    $region31: #{rnn_decoder_rollout.1} parent=5 // pred_region
      // Predicated region
      $region33: #{rnn_decoder_rollout.1} parent=31 // pred_check
        %p201 = pneg %p33
      $region34: #{rnn_decoder_rollout.1} parent=31 // pred_check_branch
        %203 = sbr.rel (%p201) target = $region36
      $region35: #{rnn_decoder_rollout.1} parent=31 // pred_region
        %p204 = scmp.lt.s32.totalorder %s13, 7
        %s205 = scalar_select %p204, %s13, 7
        %s206 = smul.addr %s205, 2
        %s207 = scalar_lea.vmem %s0, %s206
      $region36: #{rnn_decoder_rollout.1} parent=31 // pred_fallthru
        _
    $region32: #{rnn_decoder_rollout.1} parent=5 // pred_fallthru
      _
    %p208 = scmp.le.s32.totalorder 1, %s13
    %p209 = scmp.lt.s32.totalorder %s13, 9
    %p210 = pnand %p208, %p209
    %p211 = pneg %p210
    // Predicated region
    $region37: #{rnn_decoder_rollout.1} parent=5 // pred_check
      _
    $region38: #{rnn_decoder_rollout.1} parent=5 // pred_check_branch
      %213 = sbr.rel (%p210) target = $region40
    $region39: #{rnn_decoder_rollout.1} parent=5 // pred_region
      %s214 = ssub.s32 %s13, 1
      %p215 = scmp.lt.s32.totalorder %s18, 7
      %s216 = scalar_select %p215, %s18, 7
      %s217 = smul.addr %s216, 2
      %s218 = scalar_lea.vmem %s0, %s217
      %p219 = pneg %p39
      %p220 = pneg %p36
      %p221 = pneg %p60
      %p222 = pneg %p57
      %p223 = pneg %p81
      %p224 = pneg %p78
      %p225 = pneg %p102
      %p226 = pneg %p99
      %p227 = pneg %p123
      %p228 = pneg %p120
      %p229 = pneg %p149
      %p230 = pneg %p146
      %p231 = scmp.lt.s32.totalorder %s18, 7
      %s232 = scalar_select %p231, %s18, 7
      %s233 = smul.addr %s232, 2
      %s234 = scalar_lea.vmem %s5, %s233
      %p235 = pneg %p170
      %p236 = pneg %p167
      %p237 = scmp.lt.s32.totalorder %s18, 7
      %s238 = scalar_select %p237, %s18, 7
      %s239 = smul.addr %s238, 2
      %s240 = scalar_lea.vmem %s0, %s239
      %p241 = scmp.lt.s32.totalorder %s18, 7
      %s242 = scalar_select %p241, %s18, 7
      %s243 = smul.addr %s242, 2
      %s244 = scalar_lea.vmem %s5, %s243
      %p245 = scmp.eq.s32.totalorder %s18, 0
      // Predicated region
      $region41: #{rnn_decoder_rollout.1} parent=39 // pred_check
        %p246 = pneg %p245
      $region42: #{rnn_decoder_rollout.1} parent=39 // pred_check_branch
        %248 = sbr.rel (%p246) target = $region44
      $region43: #{rnn_decoder_rollout.1} parent=39 // pred_region
        %v249 = vld [vmem:[%s1] sm:$0x3]
        %vm250 = vcmask 254976
        %251 = vst.msk [vmem:[%s6] sm:$0x3] %vm250, %v249
      $region44: #{rnn_decoder_rollout.1} parent=39 // pred_fallthru
        _
      %v252 = vld [vmem:[%s240] sm:$0x3]
      %v253 = vld [vmem:[%s6] sm:$0x3]
      %v254 = vld [vmem:[%s3] sm:$0x1]
      %v255 = vld [vmem:[%s3 + $0x1] sm:$0x1]
      %v256 = vld [vmem:[%s3 + $0x2] sm:$0x1]
      %258 = vset.pattern.permute.xlu0 0
      %259 = vperm.xlu0 %258, %v252
      %v260 = vpop.permute.xlu0 %259
      %v262 = vlaneseq
      %v263 = vshrl.u32 %v262, 7
      %v264 = vsub.s32 0, %v263
      %v265 = vrot.slane %v254, %v264
      %v266 = vmul.f32 %v260, %v265
      %v267 = vlaneseq
      %v268 = vshrl.u32 %v267, 7
      %v269 = vsub.s32 0, %v268
      %v270 = vrot.slane %v255, %v269
      %v271 = vadd.f32 %v266, %v270
      %v272 = vld [vmem:[%s2] sm:$0xff]
      %v273 = vld [vmem:[%s2 + $0x8] sm:$0xff]
      %v274 = vld [vmem:[%s2 + $0x10] sm:$0xff]
      %v275 = vld [vmem:[%s2 + $0x18] sm:$0xff]
      %v276 = vlaneseq
      %v277 = vshrl.u32 %v276, 7
      %v278 = vsub.s32 0, %v277
      %v279 = vrot.slane %v256, %v278
      %vm280 = vcmask 261120
      %v282 = vsel %vm280, %v253, 0
      %284 = vmatprep.subr.mxu0 0.0
      %285 = vmatpush1.msra.mxu0 %v272
      %286 = vmatprep.subr.mxu0 0.0
      %287 = vmatpush1.msra.mxu0 %v273
      %288 = vmatprep.subr.mxu0 0.0
      %289 = vmatpush1.msra.mxu0 %v274
      %290 = vmatprep.subr.mxu0 0.0
      %291 = vmatpush1.msra.mxu0 %v275
      %292 = vmatprep.subr.mxu0 0.0
      %293 = vmatpush1.msra.mxu0 0.0
      %294 = vmatprep.subr.mxu0 0.0
      %295 = vmatpush1.msra.mxu0 0.0
      %296 = vmatprep.subr.mxu0 0.0
      %297 = vmatpush1.msra.mxu0 0.0
      %298 = vmatprep.subr.mxu0 0.0
      %299 = vmatpush1.msra.mxu0 0.0
      %300 = vmatprep.subr.mxu0 0.0
      %301 = vmatpush1.msra.mxu0 0.0
      %302 = vmatprep.subr.mxu0 0.0
      %303 = vmatpush1.msra.mxu0 0.0
      %304 = vmatprep.subr.mxu0 0.0
      %305 = vmatpush1.msra.mxu0 0.0
      %306 = vmatprep.subr.mxu0 0.0
      %307 = vmatpush1.msra.mxu0 0.0
      %308 = vmatprep.subr.mxu0 0.0
      %309 = vmatpush1.msra.mxu0 0.0
      %310 = vmatprep.subr.mxu0 0.0
      %311 = vmatpush1.msra.mxu0 0.0
      %312 = vmatprep.subr.mxu0 0.0
      %313 = vmatpush1.msra.mxu0 0.0
      %314 = vmatprep.subr.mxu0 0.0
      %315 = vmatpush1.msra.mxu0 0.0
      %316 = vmatprep.subr.mxu0 0.0
      %317 = vmatpush1.msra.mxu0 0.0
      %318 = vmatprep.subr.mxu0 0.0
      %319 = vmatpush1.msra.mxu0 0.0
      %320 = vmatprep.subr.mxu0 0.0
      %321 = vmatpush1.msra.mxu0 0.0
      %322 = vmatprep.subr.mxu0 0.0
      %323 = vmatpush1.msra.mxu0 0.0
      %324 = vmatprep.subr.mxu0 0.0
      %325 = vmatpush1.msra.mxu0 0.0
      %326 = vmatprep.subr.mxu0 0.0
      %327 = vmatpush1.msra.mxu0 0.0
      %328 = vmatprep.subr.mxu0 0.0
      %329 = vmatpush1.msra.mxu0 0.0
      %330 = vmatprep.subr.mxu0 0.0
      %331 = vmatpush1.msra.mxu0 0.0
      %332 = vmatprep.subr.mxu0 0.0
      %333 = vmatpush1.msra.mxu0 0.0
      %334 = vmatprep.subr.mxu0 0.0
      %335 = vmatpush1.msra.mxu0 0.0
      %336 = vmatprep.subr.mxu0 0.0
      %337 = vmatpush1.msra.mxu0 0.0
      %338 = vmatprep.subr.mxu0 0.0
      %339 = vmatpush1.msra.mxu0 0.0
      %340 = vmatprep.subr.mxu0 0.0
      %341 = vmatpush1.msra.mxu0 0.0
      %342 = vmatprep.subr.mxu0 0.0
      %343 = vmatpush1.msra.mxu0 0.0
      %344 = vmatprep.subr.mxu0 0.0
      %345 = vmatpush1.msra.mxu0 0.0
      %346 = vmatprep.subr.mxu0 0.0
      %347 = vmatpush1.msra.mxu0 0.0
      %348 = vmatprep.mubr.f32.mxu0 0.0
      %349 = vmatmul.mubr.f32.gmra.mrb[0].mxu0 %v282
      %v350 = vpop.f32.mrb[0].mxu0
      %v351 = vadd.f32 %v279, %v350
      %v352 = vpop.f32.mrb[0].mxu0
      %353 = vdwg.mxu0
      %v354 = vadd.f32 %v271, %v351
      %v355 = vxor.u32 %v354, 2147483648
      %v356 = vmul.f32 %v355, 1.442695
      %v357 = vpow.pop %v356
      %v358 = vadd.f32 %v357, 1.0
      %v359 = vrcp.pop %v358
      %v360 = vmul.f32 1.0, %v359
      %362 = vrot.lane.b32.xlu0 %v351, 64
      %v363 = vpop.permute.xlu0 %362
      %v365 = vmul.f32 %v360, %v363
      %367 = vrot.lane.b32.xlu0 %v365, 64
      %v368 = vpop.permute.xlu0 %367
      %v370 = vadd.f32 %v271, %v368
      %v371 = vtanh.pop %v370
      %v372 = vsub.f32 1.0, %v360
      %374 = vrot.lane.b32.xlu0 %v371, 96
      %v375 = vpop.permute.xlu0 %374
      %v377 = vmul.f32 %v372, %v375
      %378 = vrot.lane.b32.xlu0 %v253, 32
      %v379 = vpop.permute.xlu0 %378
      %v381 = vmul.f32 %v360, %v379
      %v382 = vadd.f32 %v377, %v381
      %384 = vrot.lane.b32.xlu0 %v382, 96
      %v385 = vpop.permute.xlu0 %384
      %vm387 = vcmask 254976
      %388 = vst.msk [vmem:[%s6] sm:$0x3] %vm387, %v385
      %v389 = vld [vmem:[%s4] sm:$0xff]
      %v390 = vld [vmem:[%s4 + $0x8] sm:$0xff]
      %v391 = vld [vmem:[%s4 + $0x10] sm:$0xff]
      %v392 = vld [vmem:[%s4 + $0x18] sm:$0xff]
      %v393 = vld [vmem:[%s4 + $0x20] sm:$0x1]
      %v394 = vlaneseq
      %v395 = vshrl.u32 %v394, 7
      %v396 = vsub.s32 0, %v395
      %v397 = vrot.slane %v393, %v396
      %v398 = vsel %vm280, %v385, 0
      %400 = vmatprep.subr.mxu0 0.0
      %401 = vmatpush1.msra.mxu0 %v389
      %402 = vmatprep.subr.mxu0 0.0
      %403 = vmatpush1.msra.mxu0 %v390
      %404 = vmatprep.subr.mxu0 0.0
      %405 = vmatpush1.msra.mxu0 %v391
      %406 = vmatprep.subr.mxu0 0.0
      %407 = vmatpush1.msra.mxu0 %v392
      %408 = vmatprep.subr.mxu0 0.0
      %409 = vmatpush1.msra.mxu0 0.0
      %410 = vmatprep.subr.mxu0 0.0
      %411 = vmatpush1.msra.mxu0 0.0
      %412 = vmatprep.subr.mxu0 0.0
      %413 = vmatpush1.msra.mxu0 0.0
      %414 = vmatprep.subr.mxu0 0.0
      %415 = vmatpush1.msra.mxu0 0.0
      %416 = vmatprep.subr.mxu0 0.0
      %417 = vmatpush1.msra.mxu0 0.0
      %418 = vmatprep.subr.mxu0 0.0
      %419 = vmatpush1.msra.mxu0 0.0
      %420 = vmatprep.subr.mxu0 0.0
      %421 = vmatpush1.msra.mxu0 0.0
      %422 = vmatprep.subr.mxu0 0.0
      %423 = vmatpush1.msra.mxu0 0.0
      %424 = vmatprep.subr.mxu0 0.0
      %425 = vmatpush1.msra.mxu0 0.0
      %426 = vmatprep.subr.mxu0 0.0
      %427 = vmatpush1.msra.mxu0 0.0
      %428 = vmatprep.subr.mxu0 0.0
      %429 = vmatpush1.msra.mxu0 0.0
      %430 = vmatprep.subr.mxu0 0.0
      %431 = vmatpush1.msra.mxu0 0.0
      %432 = vmatprep.subr.mxu0 0.0
      %433 = vmatpush1.msra.mxu0 0.0
      %434 = vmatprep.subr.mxu0 0.0
      %435 = vmatpush1.msra.mxu0 0.0
      %436 = vmatprep.subr.mxu0 0.0
      %437 = vmatpush1.msra.mxu0 0.0
      %438 = vmatprep.subr.mxu0 0.0
      %439 = vmatpush1.msra.mxu0 0.0
      %440 = vmatprep.subr.mxu0 0.0
      %441 = vmatpush1.msra.mxu0 0.0
      %442 = vmatprep.subr.mxu0 0.0
      %443 = vmatpush1.msra.mxu0 0.0
      %444 = vmatprep.subr.mxu0 0.0
      %445 = vmatpush1.msra.mxu0 0.0
      %446 = vmatprep.subr.mxu0 0.0
      %447 = vmatpush1.msra.mxu0 0.0
      %448 = vmatprep.subr.mxu0 0.0
      %449 = vmatpush1.msra.mxu0 0.0
      %450 = vmatprep.subr.mxu0 0.0
      %451 = vmatpush1.msra.mxu0 0.0
      %452 = vmatprep.subr.mxu0 0.0
      %453 = vmatpush1.msra.mxu0 0.0
      %454 = vmatprep.subr.mxu0 0.0
      %455 = vmatpush1.msra.mxu0 0.0
      %456 = vmatprep.subr.mxu0 0.0
      %457 = vmatpush1.msra.mxu0 0.0
      %458 = vmatprep.subr.mxu0 0.0
      %459 = vmatpush1.msra.mxu0 0.0
      %460 = vmatprep.subr.mxu0 0.0
      %461 = vmatpush1.msra.mxu0 0.0
      %462 = vmatprep.subr.mxu0 0.0
      %463 = vmatpush1.msra.mxu0 0.0
      %464 = vmatprep.mubr.f32.mxu0 0.0
      %465 = vmatmul.mubr.f32.gmra.mrb[0].mxu0 %v398
      %v466 = vpop.f32.mrb[0].mxu0
      %v467 = vadd.f32 %v397, %v466
      %v468 = vpop.f32.mrb[0].mxu0
      %469 = vdwg.mxu0
      %vm470 = vcmask 25600
      %471 = vst.msk [vmem:[%s244] sm:$0x3] %vm470, %v467
      %p472 = scmp.lt.s32.totalorder %s18, 7
      %s473 = scalar_select %p472, %s18, 7
      %s474 = smul.addr %s473, 2
      %s475 = scalar_lea.vmem %s5, %s474
      // Predicated region
      $region45: #{rnn_decoder_rollout.1} parent=39 // pred_check
        %p476 = pneg %p146
      $region46: #{rnn_decoder_rollout.1} parent=39 // pred_check_branch
        %478 = sbr.rel (%p476) target = $region48
      $region47: #{rnn_decoder_rollout.1} parent=39 // pred_region
        _
      $region48: #{rnn_decoder_rollout.1} parent=39 // pred_fallthru
        _
      // Predicated region
      $region49: #{rnn_decoder_rollout.1} parent=39 // pred_check
        %p479 = pneg %p167
      $region50: #{rnn_decoder_rollout.1} parent=39 // pred_check_branch
        %481 = sbr.rel (%p479) target = $region52
      $region51: #{rnn_decoder_rollout.1} parent=39 // pred_region
        _
      $region52: #{rnn_decoder_rollout.1} parent=39 // pred_fallthru
        _
      // Predicated region
      $region53: #{rnn_decoder_rollout.1} parent=39 // pred_check
        %p482 = pneg %p167
      $region54: #{rnn_decoder_rollout.1} parent=39 // pred_check_branch
        %484 = sbr.rel (%p482) target = $region56
      $region55: #{rnn_decoder_rollout.1} parent=39 // pred_region
        _
      $region56: #{rnn_decoder_rollout.1} parent=39 // pred_fallthru
        _
    $region40: #{rnn_decoder_rollout.1} parent=5 // pred_fallthru
      _
    %p485 = scmp.le.s32.totalorder 2, %s13
    // Predicated region
    $region57: #{rnn_decoder_rollout.1} parent=5 // pred_check
      %p486 = pneg %p485
    $region58: #{rnn_decoder_rollout.1} parent=5 // pred_check_branch
      %488 = sbr.rel (%p486) target = $region60
    $region59: #{rnn_decoder_rollout.1} parent=5 // pred_region
      %s489 = ssub.s32 %s13, 2
      // Predicated region
      $region61: #{rnn_decoder_rollout.1} parent=59 // pred_check
        %p490 = pneg %p152
      $region62: #{rnn_decoder_rollout.1} parent=59 // pred_check_branch
        %492 = sbr.rel (%p490) target = $region64
      $region63: #{rnn_decoder_rollout.1} parent=59 // pred_region
        %p493 = scmp.lt.s32.totalorder %s19, 7
        %s494 = scalar_select %p493, %s19, 7
        %s495 = smul.addr %s494, 2
        %s496 = scalar_lea.vmem %s5, %s495
      $region64: #{rnn_decoder_rollout.1} parent=59 // pred_fallthru
        _
    $region60: #{rnn_decoder_rollout.1} parent=5 // pred_fallthru
      _
  $region6: #{rnn_decoder_rollout.1} parent=0 // loop_footer
    %s17 = sadd.s32 1, %s13
  $region7: #{rnn_decoder_rollout.1} parent=0 // loop_footer_branch
    %12 = sbr.rel target = $region3
  $region8: #{rnn_decoder_rollout.1} parent=0 // loop_exit
    _

</llo_original>
